<compile_context>
chip_gen: v6e
topology: v6e:2x2x1
jax: 0.10.0
libtpu: 0.0.40
codegen_flags: <defaults>
</compile_context>

<pallas_src>
import jax
import jax.numpy as jnp
from jax.experimental import pallas as pl
from jax.experimental.pallas import tpu as pltpu


def _round_up(x, m):
    return ((x + m - 1) // m) * m


def _tpu_tile_config():
    """Generation-aware (tm, tn, tk, vmem_limit_bytes).

    Roofline crossovers (arith. intensity needed to be MXU-bound, AI ≈
    tm*tn/(tm+tn) with bf16 operands):
      v6e ~650 flop/B -> 1024x2048 tile ; v7x ~310 / v5e ~240 -> 512x1024 tile.
    """
    try:
        kind = jax.devices()[0].device_kind.lower()
    except Exception:
        kind = ""
    try:
        vmem_cap = int(pltpu.get_tpu_info().vmem_capacity_bytes)
    except Exception:
        vmem_cap = 64 * 1024 * 1024  # conservative (v7x-sized) fallback

    if "v6" in kind:
        tm, tn, tk = 1024, 2048, 1024
    else:  # v5e / v7x / unknown: smaller tiles already reach the MXU roofline
        tm, tn, tk = 512, 1024, 1024

    # Leave ~25% physical headroom (compiler scratch, semaphores, etc.).
    vmem_limit = min((vmem_cap * 3) // 4, 100 * 1024 * 1024)
    return tm, tn, tk, vmem_limit


def _lm_head_kernel(x_ref, w_ref, b_ref, o_ref):
    # x_ref: (tm, tk) bf16 | w_ref: (tk, tn) bf16 | b_ref: (1, tn) f32
    # o_ref: (tm, tn) f32 output tile, resident in VMEM across the K axis.
    k = pl.program_id(2)

    @pl.when(k == 0)
    def _init():
        # Bias seeds the resident output tile: replaces both the zero-init of
        # a scratch accumulator and the k==last copy/bias epilogue.
        o_ref[...] = jnp.broadcast_to(b_ref[...], o_ref.shape)

    o_ref[...] += jnp.dot(
        x_ref[...], w_ref[...], preferred_element_type=jnp.float32
    )


def lm_head_pallas(x2d, w_p, b_p, *, vocab, tm, tn, tk, vmem_limit_bytes):
    """x2d: [M, H] f32 activations; w_p: [Hp, Vp] bf16 (pre-cast, pre-padded);
    b_p: [1, Vp] f32 (pre-padded). Returns [M, vocab] f32 logits."""
    M, H = x2d.shape
    Hp, Vp = w_p.shape

    # Prefer one tile covering all of M (W then streams exactly once); keep
    # bf16 sublane (16) alignment.
    tm = min(tm, _round_up(M, 16))
    Mp = _round_up(M, tm)

    # Per-call prep is only the activation cast/pad (weights already done).
    x_bf = x2d.astype(jnp.bfloat16)
    if (Mp, Hp) != (M, H):
        x_bf = jnp.zeros((Mp, Hp), jnp.bfloat16).at[:M, :H].set(x_bf)

    grid = (Mp // tm, Vp // tn, Hp // tk)

    out_p = pl.pallas_call(
        _lm_head_kernel,
        out_shape=jax.ShapeDtypeStruct((Mp, Vp), jnp.float32),
        grid_spec=pltpu.PrefetchScalarGridSpec(
            num_scalar_prefetch=0,
            grid=grid,
            in_specs=[
                pl.BlockSpec((tm, tk), lambda i, j, k: (i, k)),   # activations
                pl.BlockSpec((tk, tn), lambda i, j, k: (k, j)),   # weights
                pl.BlockSpec((1, tn), lambda i, j, k: (0, j)),    # bias (per j)
            ],
            out_specs=pl.BlockSpec((tm, tn), lambda i, j, k: (i, j)),
        ),
        compiler_params=pltpu.CompilerParams(
            # Output tile is resident across K (accumulator); M/V shardable.
            dimension_semantics=("parallel", "parallel", "arbitrary"),
            vmem_limit_bytes=vmem_limit_bytes,
        ),
    )(x_bf, w_p, b_p)

    if (Mp, Vp) != (M, vocab):
        out_p = out_p[:M, :vocab]
    return out_p


class SyntheticLMHead:
    """Deterministic synthetic 'inner' model: logits = x @ W + b."""

    def __init__(self, hidden, vocab, key):
        kw, kb = jax.random.split(key)
        self.w = jax.random.normal(kw, (hidden, vocab), jnp.float32) * 0.02
        self.b = jax.random.normal(kb, (vocab,), jnp.float32) * 0.01
        self.hidden, self.vocab = hidden, vocab

        tm, tn, tk, vmem = _tpu_tile_config()
        self._tm = tm
        self._tk = min(tk, _round_up(hidden, 128))
        self._tn = min(tn, _round_up(vocab, 128))
        self._vmem = vmem

        Hp = _round_up(hidden, self._tk)
        Vp = _round_up(vocab, self._tn)

        # Hoisted out of the hot path: bf16 cast + tile-aligned padding of the
        # (large) weight matrix and bias happen exactly once.
        w_bf = self.w.astype(jnp.bfloat16)
        if (Hp, Vp) != (hidden, vocab):
            w_bf = jnp.zeros((Hp, Vp), jnp.bfloat16).at[:hidden, :vocab].set(w_bf)
        self._w_p = w_bf

        b2d = self.b.reshape(1, vocab)
        if Vp != vocab:
            b2d = jnp.zeros((1, Vp), jnp.float32).at[:, :vocab].set(b2d)
        self._b_p = b2d

    def __call__(self, x):
        B, S, H = x.shape
        out2d = lm_head_pallas(
            x.reshape(B * S, H), self._w_p, self._b_p,
            vocab=self.vocab, tm=self._tm, tn=self._tn, tk=self._tk,
            vmem_limit_bytes=self._vmem)
        return out2d.reshape(B, S, self.vocab)


class LangWrapper:
    """JAX equivalent of _LangWrapper: forward(*args, **kwargs) delegates."""

    def __init__(self, inner):
        self.model = inner

    def __call__(self, *args, **kwargs):
        return self.model(*args, **kwargs)


def _reference(x, w, b):
    """Reference with the same bf16-operand / f32-accumulate numerics."""
    B, S, H = x.shape
    x2d = x.reshape(B * S, H).astype(jnp.bfloat16)
    ref = jnp.dot(x2d, w.astype(jnp.bfloat16),
                  preferred_element_type=jnp.float32) + b
    return ref.reshape(B, S, -1)


if __name__ == "__main__":
    key = jax.random.PRNGKey(0)
    k_in, k_param, k_in2, k_param2 = jax.random.split(key, 4)

    # ---- small demo shapes consistent with the module (grid collapses to 1) --
    batch, seq, hidden, vocab = 2, 8, 32, 128
    x = jax.random.normal(k_in, (batch, seq, hidden), jnp.float32)
    inner = SyntheticLMHead(hidden, vocab, k_param)
    wrapped = LangWrapper(inner)

    out = jax.block_until_ready(wrapped(x))
    ref = _reference(x, inner.w, inner.b)
    assert out.shape == (batch, seq, vocab)
    assert jnp.allclose(out, ref, atol=5e-3, rtol=5e-3), "small-shape mismatch"

    # ---- moderate shapes that exercise the tiled path + resident accumulator -
    batch2, seq2, hidden2, vocab2 = 4, 128, 1024, 2048
    x2 = jax.random.normal(k_in2, (batch2, seq2, hidden2), jnp.float32)
    inner2 = SyntheticLMHead(hidden2, vocab2, k_param2)
    wrapped2 = LangWrapper(inner2)

    out2 = jax.block_until_ready(wrapped2(x2))
    ref2 = _reference(x2, inner2.w, inner2.b)
    assert out2.shape == (batch2, seq2, vocab2)
    assert jnp.allclose(out2, ref2, atol=5e-3, rtol=5e-3), "tiled-shape mismatch"

    print("KERNEL_OK")
</pallas_src>

<mosaic_0001>
module attributes {stable_mosaic.version = 11 : i64} {
  func.func @_lm_head_kernel(%arg0: i32, %arg1: i32, %arg2: i32, %arg3: memref<16x128xbf16, #tpu.memory_space<vmem>>, %arg4: memref<128x128xbf16, #tpu.memory_space<vmem>>, %arg5: memref<1x128xf32, #tpu.memory_space<vmem>>, %arg6: memref<16x128xf32, #tpu.memory_space<vmem>>) attributes {dimension_semantics = [#tpu.dimension_semantics<parallel>, #tpu.dimension_semantics<parallel>, #tpu.dimension_semantics<arbitrary>], iteration_bounds = array<i64: 1, 1, 1>, scalar_prefetch = 0 : i64, scratch_operands = 0 : i64, tpu.core_type = #tpu.core_type<tc>, window_params = [{transform_indices = @transform_0, window_bounds = array<i64: 16, 128>}, {transform_indices = @transform_1, window_bounds = array<i64: 128, 128>}, {transform_indices = @transform_2, window_bounds = array<i64: 1, 128>}, {transform_indices = @transform_3, window_bounds = array<i64: 16, 128>}]} {
    %c0_i32 = arith.constant 0 : i32
    %0 = arith.cmpi eq, %arg2, %c0_i32 : i32
    %1 = arith.extui %0 : i1 to i32
    %c0_i32_0 = arith.constant 0 : i32
    %2 = arith.cmpi ne, %1, %c0_i32_0 : i32
    scf.if %2 {
      %c0_8 = arith.constant 0 : index
      %c0_9 = arith.constant 0 : index
      %9 = vector.load %arg5[%c0_8, %c0_9] : memref<1x128xf32, #tpu.memory_space<vmem>>, vector<1x128xf32>
      %10 = vector.shape_cast %9 : vector<1x128xf32> to vector<1x128xf32>
      %11 = vector.broadcast %10 : vector<1x128xf32> to vector<16x128xf32>
      %c0_10 = arith.constant 0 : index
      %c0_11 = arith.constant 0 : index
      %12 = vector.load %arg6[%c0_10, %c0_11] : memref<16x128xf32, #tpu.memory_space<vmem>>, vector<16x128xf32>
      tpu.vector_store %arg6[%c0_10, %c0_11], %11 {strides = array<i32>} : memref<16x128xf32, #tpu.memory_space<vmem>>, vector<16x128xf32>,
    } else {
    }
    %c0 = arith.constant 0 : index
    %c0_1 = arith.constant 0 : index
    %3 = vector.load %arg6[%c0, %c0_1] : memref<16x128xf32, #tpu.memory_space<vmem>>, vector<16x128xf32>
    %c0_2 = arith.constant 0 : index
    %c0_3 = arith.constant 0 : index
    %4 = vector.load %arg3[%c0_2, %c0_3] : memref<16x128xbf16, #tpu.memory_space<vmem>>, vector<16x128xbf16>
    %c0_4 = arith.constant 0 : index
    %c0_5 = arith.constant 0 : index
    %5 = vector.load %arg4[%c0_4, %c0_5] : memref<128x128xbf16, #tpu.memory_space<vmem>>, vector<128x128xbf16>
    %cst = arith.constant dense<0.000000e+00> : vector<16x128xf32>
    %6 = tpu.matmul %4, %5, %cst {dimension_numbers = #tpu.dot_dimension_numbers<[1], [0], [0], [1], [0, 0, 1, 1], [], []>} : vector<16x128xbf16>, vector<128x128xbf16>, vector<16x128xf32> -> vector<16x128xf32>
    %7 = arith.addf %3, %6 : vector<16x128xf32>
    %c0_6 = arith.constant 0 : index
    %c0_7 = arith.constant 0 : index
    %8 = vector.load %arg6[%c0_6, %c0_7] : memref<16x128xf32, #tpu.memory_space<vmem>>, vector<16x128xf32>
    tpu.vector_store %arg6[%c0_6, %c0_7], %7 {strides = array<i32>} : memref<16x128xf32, #tpu.memory_space<vmem>>, vector<16x128xf32>,
    return
  }
  func.func @transform_0(%arg0: i32, %arg1: i32, %arg2: i32) -> (i32, i32) {
    %c0_i32 = arith.constant 0 : i32
    return %arg0, %arg2 : i32, i32
  }
  func.func @transform_1(%arg0: i32, %arg1: i32, %arg2: i32) -> (i32, i32) {
    %c0_i32 = arith.constant 0 : i32
    return %arg2, %arg1 : i32, i32
  }
  func.func @transform_2(%arg0: i32, %arg1: i32, %arg2: i32) -> (i32, i32) {
    %c0_i32 = arith.constant 0 : i32
    %c0_i32_0 = arith.constant 0 : i32
    return %c0_i32, %arg1 : i32, i32
  }
  func.func @transform_3(%arg0: i32, %arg1: i32, %arg2: i32) -> (i32, i32) {
    %c0_i32 = arith.constant 0 : i32
    return %arg0, %arg1 : i32, i32
  }
}

</mosaic_0001>

<llo_original>
// kernel: tpu_custom_call.1
$region0: #{tpu_custom_call.1}
  #allocation0 [shape = 'u32[]', space=smem, size = 0x4, offset = 0x4, fixed_abs, tag = 'smem constant byte address 0x4 - core index']
  #allocation1 [shape = 'u32[144,128]{1,0:T(1,128)}', space=vmem, size = 0x12000, scoped, tag = 'internal scratch']
  %s0 = inlined_call_operand.hbm [shape: bf16[16,128], index: 0, kind: input, shape index: {}]
  %s1 = inlined_call_operand.hbm [shape: bf16[128,128], index: 1, kind: input, shape index: {}]
  %s2 = inlined_call_operand.vmem [shape: f32[1,128], index: 2, kind: input, shape index: {}]
  %s3 = inlined_call_operand.hbm [shape: f32[16,128], index: 3, kind: output, shape index: {}]
  %s4 = sld [smem:[#allocation0]]
  $region34: #{tpu_custom_call.1} parent=0
    _
  %s6 = ssub.s32 1, %s4
  %s7 = scalar_select 0, %s6, %s4
  $region1: #{tpu_custom_call.1} parent=0
    #allocation2 [shape = 'u8[4096]{0}', space=vmem, size = 0x1000, scoped, tag = 'input window, operand 0, single buffered']
    #allocation3 [shape = 's32[1]{0}', space=sflag, size = 0x4, scoped, tag = 'scoped memory for tpu_custom_call.1']
    #allocation4 [shape = 's32[1]{0}', space=sflag, size = 0x4, scoped, tag = 'scoped memory for tpu_custom_call.1']
    #allocation5 [shape = 'u8[32768]{0}', space=vmem, size = 0x8000, scoped, tag = 'input window, operand 1, single buffered']
    #allocation6 [shape = 's32[1]{0}', space=sflag, size = 0x4, scoped, tag = 'scoped memory for tpu_custom_call.1']
    #allocation7 [shape = 'u8[8192]{0}', space=vmem, size = 0x2000, scoped, tag = 'output window, operand 0, single buffered']
    %8 = vsyncpa [#allocation3], 0
    %9 = vsyncpa [#allocation6], 0
    %10 = vsyncpa [#allocation4], 0
    // Predicated region
    $region2: #{tpu_custom_call.1} parent=1 // pred_check
      _
    $region3: #{tpu_custom_call.1} parent=1 // pred_check_branch
      %12 = sbr.rel (0) target = $region5
    $region4: #{tpu_custom_call.1} parent=1 // pred_region
      %s14 = ssub.s32 128, 128
      %15 = vsyncadd [#allocation3], %s14
      %s16 = sshll.u32 [#allocation2], 4
      %s17 = int_to_ptr.vmem [resolvable:$true] %s16
      %22 = dma.hbm_to_vmem [thread:$0]  %s0, 128, %s17, [#allocation3], 64, 64, 4
    $region5: #{tpu_custom_call.1} parent=1 // pred_fallthru
      _
    // Predicated region
    $region6: #{tpu_custom_call.1} parent=1 // pred_check
      _
    $region7: #{tpu_custom_call.1} parent=1 // pred_check_branch
      %24 = sbr.rel (0) target = $region9
    $region8: #{tpu_custom_call.1} parent=1 // pred_region
      %s26 = ssub.s32 1024, 1024
      %27 = vsyncadd [#allocation6], %s26
      %s28 = sshll.u32 [#allocation5], 4
      %s29 = int_to_ptr.vmem [resolvable:$true] %s28
      %34 = dma.hbm_to_vmem [thread:$0]  %s1, 1024, %s29, [#allocation6], 64, 64, 4
    $region9: #{tpu_custom_call.1} parent=1 // pred_fallthru
      _
    // Predicated region
    $region10: #{tpu_custom_call.1} parent=1 // pred_check
      _
    $region11: #{tpu_custom_call.1} parent=1 // pred_check_branch
      %36 = sbr.rel (0) target = $region13
    $region12: #{tpu_custom_call.1} parent=1 // pred_region
      _
    $region13: #{tpu_custom_call.1} parent=1 // pred_fallthru
      _
    // Predicated region
    $region14: #{tpu_custom_call.1} parent=1 // pred_check
      _
    $region15: #{tpu_custom_call.1} parent=1 // pred_check_branch
      %38 = sbr.rel (0) target = $region17
    $region16: #{tpu_custom_call.1} parent=1 // pred_region
      %39 = dma.done [#allocation3], 128
    $region17: #{tpu_custom_call.1} parent=1 // pred_fallthru
      _
    // Predicated region
    $region18: #{tpu_custom_call.1} parent=1 // pred_check
      _
    $region19: #{tpu_custom_call.1} parent=1 // pred_check_branch
      %41 = sbr.rel (0) target = $region21
    $region20: #{tpu_custom_call.1} parent=1 // pred_region
      %42 = dma.done [#allocation6], 1024
    $region21: #{tpu_custom_call.1} parent=1 // pred_fallthru
      _
    %p44 = scmp.eq.s32.totalorder 0, 0
    // Predicated region
    $region22: #{tpu_custom_call.1} parent=1 // pred_check
      %p45 = pneg %p44
    $region23: #{tpu_custom_call.1} parent=1 // pred_check_branch
      %47 = sbr.rel (%p45) target = $region25
    $region24: #{tpu_custom_call.1} parent=1 // pred_region
      %v48 = vld [vmem:[%s2] sm:$0x1]
      %v50 = vlaneseq
      %v51 = vshrl.u32 %v50, 7
      %v52 = vsub.s32 0, %v51
      %v53 = vrot.slane %v48, %v52
      %55 = vst [vmem:[#allocation7] sm:$0xff] %v53
      %56 = vst [vmem:[#allocation7 + $0x8] sm:$0xff] %v53
    $region25: #{tpu_custom_call.1} parent=1 // pred_fallthru
      _
    %v57 = vld [vmem:[#allocation7] sm:$0xff]
    %v58 = vld [vmem:[#allocation7 + $0x8] sm:$0xff]
    %v59 = vld [vmem:[#allocation2] sm:$0xf]
    %v60 = vld [vmem:[#allocation2 + $0x4] sm:$0xf]
    %v61 = vld [vmem:[#allocation5] sm:$0xf]
    %v62 = vld [vmem:[#allocation5 + $0x4] sm:$0xf]
    %v63 = vld [vmem:[#allocation5 + $0x8] sm:$0xf]
    %v64 = vld [vmem:[#allocation5 + $0xc] sm:$0xf]
    %v65 = vld [vmem:[#allocation5 + $0x10] sm:$0xf]
    %v66 = vld [vmem:[#allocation5 + $0x14] sm:$0xf]
    %v67 = vld [vmem:[#allocation5 + $0x18] sm:$0xf]
    %v68 = vld [vmem:[#allocation5 + $0x1c] sm:$0xf]
    %v69 = vld [vmem:[#allocation5 + $0x20] sm:$0xf]
    %v70 = vld [vmem:[#allocation5 + $0x24] sm:$0xf]
    %v71 = vld [vmem:[#allocation5 + $0x28] sm:$0xf]
    %v72 = vld [vmem:[#allocation5 + $0x2c] sm:$0xf]
    %v73 = vld [vmem:[#allocation5 + $0x30] sm:$0xf]
    %v74 = vld [vmem:[#allocation5 + $0x34] sm:$0xf]
    %v75 = vld [vmem:[#allocation5 + $0x38] sm:$0xf]
    %v76 = vld [vmem:[#allocation5 + $0x3c] sm:$0xf]
    %v79 = vunpack.c.l.b16 %v59
    %v80 = vunpack.c.l.b16 %v60
    %v81 = vpack.c.b16 %v80, %v79
    %v99 = vunpack.c.l.b16 %v61
    %v100 = vunpack.c.l.b16 %v62
    %v101 = vunpack.c.l.b16 %v63
    %v102 = vunpack.c.l.b16 %v64
    %v103 = vunpack.c.l.b16 %v65
    %v104 = vunpack.c.l.b16 %v66
    %v105 = vunpack.c.l.b16 %v67
    %v106 = vunpack.c.l.b16 %v68
    %v107 = vunpack.c.l.b16 %v69
    %v108 = vunpack.c.l.b16 %v70
    %v109 = vunpack.c.l.b16 %v71
    %v110 = vunpack.c.l.b16 %v72
    %v111 = vunpack.c.l.b16 %v73
    %v112 = vunpack.c.l.b16 %v74
    %v113 = vunpack.c.l.b16 %v75
    %v114 = vunpack.c.l.b16 %v76
    %v115 = vpack.c.b16 %v100, %v99
    %v116 = vpack.c.b16 %v102, %v101
    %v117 = vpack.c.b16 %v104, %v103
    %v118 = vpack.c.b16 %v106, %v105
    %v119 = vpack.c.b16 %v108, %v107
    %v120 = vpack.c.b16 %v110, %v109
    %v121 = vpack.c.b16 %v112, %v111
    %v122 = vpack.c.b16 %v114, %v113
    %131 = vmatprep.subr.bf16.mxu0 0
    %132 = vmatpush1.bf16.msra.mxu0 %v122
    %133 = vmatprep.subr.bf16.mxu0 0
    %134 = vmatpush1.bf16.msra.mxu0 %v121
    %135 = vmatprep.subr.bf16.mxu0 0
    %136 = vmatpush1.bf16.msra.mxu0 %v120
    %137 = vmatprep.subr.bf16.mxu0 0
    %138 = vmatpush1.bf16.msra.mxu0 %v119
    %139 = vmatprep.subr.bf16.mxu0 0
    %140 = vmatpush1.bf16.msra.mxu0 %v118
    %141 = vmatprep.subr.bf16.mxu0 0
    %142 = vmatpush1.bf16.msra.mxu0 %v117
    %143 = vmatprep.subr.bf16.mxu0 0
    %144 = vmatpush1.bf16.msra.mxu0 %v116
    %145 = vmatprep.subr.bf16.mxu0 0
    %146 = vmatpush1.bf16.msra.mxu0 %v115
    %147 = vmatprep.subr.bf16.mxu0 0
    %148 = vmatpush2.bf16.msra.mxu0 0
    %149 = vmatprep.subr.bf16.mxu0 0
    %150 = vmatpush2.bf16.msra.mxu0 0
    %151 = vmatprep.subr.bf16.mxu0 0
    %152 = vmatpush2.bf16.msra.mxu0 0
    %153 = vmatprep.subr.bf16.mxu0 0
    %154 = vmatpush2.bf16.msra.mxu0 0
    %155 = vmatprep.subr.bf16.mxu0 0
    %156 = vmatpush2.bf16.msra.mxu0 0
    %157 = vmatprep.subr.bf16.mxu0 0
    %158 = vmatpush2.bf16.msra.mxu0 0
    %159 = vmatprep.subr.bf16.mxu0 0
    %160 = vmatpush2.bf16.msra.mxu0 0
    %161 = vmatprep.subr.bf16.mxu0 0
    %162 = vmatpush2.bf16.msra.mxu0 0
    %163 = vmatprep.mubr.bf16.mxu0 0
    %164 = vmatmul.mubr.bf16.gmra.mxu0 %v81
    %v165 = vpop.f32.mrf.mxu0
    %v166 = vadd.f32 0.0, %v165
    %v167 = vpop.f32.mrf.mxu0
    %v168 = vpop.f32.mrf.mxu0
    %v169 = vadd.f32 0.0, %v168
    %v170 = vpop.f32.mrf.mxu0
    %171 = vdwg.mxu0
    %v172 = vadd.f32 %v57, %v166
    %v173 = vadd.f32 %v58, %v169
    %174 = vst [vmem:[#allocation7] sm:$0xff] %v172
    %175 = vst [vmem:[#allocation7 + $0x8] sm:$0xff] %v173
    // Predicated region
    $region26: #{tpu_custom_call.1} parent=1 // pred_check
      _
    $region27: #{tpu_custom_call.1} parent=1 // pred_check_branch
      %177 = sbr.rel (0) target = $region29
    $region28: #{tpu_custom_call.1} parent=1 // pred_region
      %s179 = ssub.s32 256, 256
      %180 = vsyncadd [#allocation4], %s179
      %s181 = sshll.u32 [#allocation7], 4
      %s182 = int_to_ptr.vmem [resolvable:$true] %s181
      %187 = dma.vmem_to_hbm [thread:$0]  %s182, 256, %s3, [#allocation4], 128, 128, 8
    $region29: #{tpu_custom_call.1} parent=1 // pred_fallthru
      _
    // Predicated region
    $region30: #{tpu_custom_call.1} parent=1 // pred_check
      _
    $region31: #{tpu_custom_call.1} parent=1 // pred_check_branch
      %189 = sbr.rel (0) target = $region33
    $region32: #{tpu_custom_call.1} parent=1 // pred_region
      %190 = dma.done [#allocation4], 256
    $region33: #{tpu_custom_call.1} parent=1 // pred_fallthru
      _
    %191 = vsyncpa [#allocation3], 1
    %192 = vsyncpa [#allocation6], 1
    %193 = vsyncpa [#allocation4], 1

</llo_original>
